<compile_context>
chip_gen: v5e
topology: v5e:2x2
jax: 0.10.0
libtpu: 0.0.40
codegen_flags: <defaults>
</compile_context>

<pallas_src>
import functools

import jax
import jax.numpy as jnp
from jax.experimental import pallas as pl
from jax.experimental.pallas import tpu as pltpu

_LANE = 128
_MIB = 1024 * 1024
_TARGET_BLOCK_BYTES = 4 * _MIB      # ~f32 bytes of one input block


def _round_up(x: int, m: int) -> int:
    return ((x + m - 1) // m) * m


def _normalize_kernel(x_ref, o_ref, *, power: int):
    x = x_ref[...]
    xf = x.astype(jnp.float32)
    if power == 2:
        # Sum of squares over the feature (lane) axis, f32 accumulation.
        s = jnp.sum(xf * xf, axis=-1, keepdims=True)           # [tile_b, 1]
        inv = jax.lax.rsqrt(s)                                   # 1 / ||x||_2
    else:
        # Generic L_p path (same semantics as the PyTorch pow/pow chain).
        s = jnp.sum(xf ** power, axis=-1, keepdims=True)
        inv = s ** (-1.0 / power)
    if x.dtype == jnp.float32:
        o_ref[...] = xf * inv
    else:
        # bf16 / low-precision inputs: scale in the native dtype so we never
        # materialize a second full-tile f32 temp (v6e/v7x have a bf16 VALU).
        o_ref[...] = (x * inv.astype(x.dtype)).astype(o_ref.dtype)


def normalize(x: jax.Array, *, power: int = 2) -> jax.Array:
    """L_p-normalize each row of a [B, D] array along the feature axis."""
    # TODO(synk): only the rank-2 [batch, feat] case used by CRD is handled;
    # higher-rank inputs (dim=1 reduction with trailing spatial dims) would
    # need a transpose/reshape wrapper.
    assert x.ndim == 2, "normalize expects a [batch, feature] array"
    B, D = x.shape
    itemsize = jnp.dtype(x.dtype).itemsize
    sub = {4: 8, 2: 16, 1: 32}.get(itemsize, 8)   # sublane packing multiple

    # Lane-dense feature dim: pad D up to a multiple of 128 with zeros (zeros
    # do not change the sum; padded output columns are sliced off below).
    D_pad = _round_up(max(D, _LANE), _LANE)

    # Row tile: ~_TARGET_BLOCK_BYTES of f32 per block, sublane-aligned.
    tile_b = max(sub, (_TARGET_BLOCK_BYTES // (D_pad * 4)) // sub * sub)
    # v7x megacore: keep at least 2 grid steps when the batch allows it.
    if B > sub:
        tile_b = min(tile_b, _round_up((B + 1) // 2, sub))
    tile_b = min(tile_b, _round_up(B, sub))
    B_pad = _round_up(B, tile_b)

    # Pad: extra rows with 1s (keeps padded rows finite), extra cols with 0s.
    if B_pad != B or D_pad != D:
        x_in = jnp.pad(
            x, ((0, B_pad - B), (0, D_pad - D)),
            constant_values=((0, 1), (0, 0)),
        )
    else:
        x_in = x

    # VMEM budget: 2x double-buffered input + 2x output + f32 working copy.
    block_native = tile_b * D_pad * itemsize
    block_f32 = tile_b * D_pad * 4
    live = 4 * block_native + 2 * block_f32
    vmem_limit = int(min(56 * _MIB, max(32 * _MIB, live + 8 * _MIB)))

    grid = (B_pad // tile_b,)
    out = pl.pallas_call(
        functools.partial(_normalize_kernel, power=power),
        out_shape=jax.ShapeDtypeStruct((B_pad, D_pad), x.dtype),
        grid_spec=pltpu.PrefetchScalarGridSpec(
            num_scalar_prefetch=0,
            grid=grid,
            in_specs=[pl.BlockSpec((tile_b, D_pad), lambda i: (i, 0))],
            out_specs=pl.BlockSpec((tile_b, D_pad), lambda i: (i, 0)),
        ),
        compiler_params=pltpu.CompilerParams(
            dimension_semantics=("parallel",),
            vmem_limit_bytes=vmem_limit,
        ),
    )(x_in)

    if B_pad != B or D_pad != D:
        out = out[:B, :D]
    return out


def _reference(x: jax.Array, power: int = 2) -> jax.Array:
    xf = x.astype(jnp.float32)
    norm = jnp.sum(xf ** power, axis=1, keepdims=True) ** (1.0 / power)
    return (xf / norm).astype(x.dtype)


if __name__ == "__main__":
    key = jax.random.PRNGKey(0)

    # Small shapes consistent with a CRD embedding: [batch, feat_dim].
    B, D = 8, 32
    x = jax.random.normal(key, (B, D), dtype=jnp.float32)
    out = jax.block_until_ready(normalize(x))
    ref = _reference(x)
    assert out.shape == ref.shape and out.dtype == ref.dtype
    assert jnp.allclose(out, ref, atol=1e-5, rtol=1e-5), "mismatch vs reference"

    # Ragged case exercising the batch/feature padding path.
    x2 = jax.random.normal(jax.random.PRNGKey(1), (6, 200), dtype=jnp.float32)
    out2 = jax.block_until_ready(normalize(x2))
    ref2 = _reference(x2)
    assert jnp.allclose(out2, ref2, atol=1e-5, rtol=1e-5), "mismatch (padded path)"

    print("KERNEL_OK")
</pallas_src>

<mosaic_0001>
module attributes {stable_mosaic.version = 11 : i64} {
  func.func @_normalize_kernel(%arg0: i32, %arg1: memref<8x128xf32, #tpu.memory_space<vmem>>, %arg2: memref<8x128xf32, #tpu.memory_space<vmem>>) attributes {dimension_semantics = [#tpu.dimension_semantics<parallel>], iteration_bounds = array<i64: 1>, scalar_prefetch = 0 : i64, scratch_operands = 0 : i64, tpu.core_type = #tpu.core_type<tc>, window_params = [{transform_indices = @transform_0, window_bounds = array<i64: 8, 128>}, {transform_indices = @transform_1, window_bounds = array<i64: 8, 128>}]} {
    %c0 = arith.constant 0 : index
    %c0_0 = arith.constant 0 : index
    %0 = vector.load %arg1[%c0, %c0_0] : memref<8x128xf32, #tpu.memory_space<vmem>>, vector<8x128xf32>
    %1 = arith.mulf %0, %0 : vector<8x128xf32>
    %cst = arith.constant dense<0.000000e+00> : vector<8xf32>
    %2 = vector.multi_reduction <add>, %1, %cst [1] : vector<8x128xf32> to vector<8xf32>
    %3 = vector.shape_cast %2 : vector<8xf32> to vector<8x1xf32>
    %4 = math.rsqrt %3 : vector<8x1xf32>
    %5 = vector.broadcast %4 : vector<8x1xf32> to vector<8x128xf32>
    %6 = arith.mulf %0, %5 : vector<8x128xf32>
    %c0_1 = arith.constant 0 : index
    %c0_2 = arith.constant 0 : index
    %7 = vector.load %arg2[%c0_1, %c0_2] : memref<8x128xf32, #tpu.memory_space<vmem>>, vector<8x128xf32>
    tpu.vector_store %arg2[%c0_1, %c0_2], %6 {strides = array<i32>} : memref<8x128xf32, #tpu.memory_space<vmem>>, vector<8x128xf32>,
    return
  }
  func.func @transform_0(%arg0: i32) -> (i32, i32) {
    %c0_i32 = arith.constant 0 : i32
    %c0_i32_0 = arith.constant 0 : i32
    return %arg0, %c0_i32 : i32, i32
  }
  func.func @transform_1(%arg0: i32) -> (i32, i32) {
    %c0_i32 = arith.constant 0 : i32
    %c0_i32_0 = arith.constant 0 : i32
    return %arg0, %c0_i32 : i32, i32
  }
}

</mosaic_0001>

<llo_original>
// kernel: tpu_custom_call.1
$region0: #{tpu_custom_call.1}
  #allocation0 [shape = 'u32[]', space=smem, size = 0x4, offset = 0x4, fixed_abs, tag = 'smem constant byte address 0x4 - core index']
  #allocation1 [shape = 'u32[72,128]{1,0:T(1,128)}', space=vmem, size = 0x9000, scoped, tag = 'internal scratch']
  %s0 = inlined_call_operand.hbm [shape: f32[8,128], index: 0, kind: input, shape index: {}]
  %s1 = inlined_call_operand.hbm [shape: f32[8,128], index: 1, kind: output, shape index: {}]
  %s2 = sld [smem:[#allocation0]]
  $region18: #{tpu_custom_call.1} parent=0
    _
  %s4 = ssub.s32 1, %s2
  %s5 = scalar_select 0, %s4, %s2
  $region1: #{tpu_custom_call.1} parent=0
    #allocation2 [shape = 'u8[4096]{0}', space=vmem, size = 0x1000, scoped, tag = 'input window, operand 0, single buffered']
    #allocation3 [shape = 's32[1]{0}', space=sflag, size = 0x4, scoped, tag = 'scoped memory for tpu_custom_call.1']
    #allocation4 [shape = 's32[1]{0}', space=sflag, size = 0x4, scoped, tag = 'scoped memory for tpu_custom_call.1']
    #allocation5 [shape = 'u8[4096]{0}', space=vmem, size = 0x1000, scoped, tag = 'output window, operand 0, single buffered']
    %6 = vsyncpa [#allocation3], 0
    %7 = vsyncpa [#allocation4], 0
    // Predicated region
    $region2: #{tpu_custom_call.1} parent=1 // pred_check
      _
    $region3: #{tpu_custom_call.1} parent=1 // pred_check_branch
      %9 = sbr.rel (0) target = $region5
    $region4: #{tpu_custom_call.1} parent=1 // pred_region
      %11 = vsyncadd [#allocation3], 0
      %s13 = sshll.u32 %s0, 4
      %s14 = int_to_ptr.hbm [resolvable:$true] %s13
      %s15 = sshll.u32 [#allocation2], 4
      %s16 = int_to_ptr.vmem [resolvable:$true] %s15
      %18 = dma.hbm_to_vmem [thread:$0]  %s14, 128, %s16, [#allocation3]
    $region5: #{tpu_custom_call.1} parent=1 // pred_fallthru
      _
    // Predicated region
    $region6: #{tpu_custom_call.1} parent=1 // pred_check
      _
    $region7: #{tpu_custom_call.1} parent=1 // pred_check_branch
      %20 = sbr.rel (0) target = $region9
    $region8: #{tpu_custom_call.1} parent=1 // pred_region
      %22 = dma.done [#allocation3], 128
    $region9: #{tpu_custom_call.1} parent=1 // pred_fallthru
      _
    %v23 = vld [vmem:[#allocation2] sm:$0xff]
    %v24 = vmul.f32 %v23, %v23
    %25 = vadd.xlane.f32.xlu0 %v24
    %v26 = vpop.xlane.xlu0 %25
    %v27 = vrsqrt.pop %v26
    %v28 = vmul.f32 %v27, %v26
    %v29 = vmul.f32 %v28, %v27
    %v30 = vmul.f32 0.5, %v29
    %v31 = vsub.f32 1.5, %v30
    %v32 = vmul.f32 %v27, %v31
    %vm33 = vweird.f32 %v26
    %vm34 = vweird.f32 %v27
    %vm35 = vmor %vm33, %vm34
    %v36 = vsel %vm35, %v27, %v32
    %v37 = vmul.f32 %v23, %v36
    %38 = vst [vmem:[#allocation5] sm:$0xff] %v37
    // Predicated region
    $region10: #{tpu_custom_call.1} parent=1 // pred_check
      _
    $region11: #{tpu_custom_call.1} parent=1 // pred_check_branch
      %40 = sbr.rel (0) target = $region13
    $region12: #{tpu_custom_call.1} parent=1 // pred_region
      %42 = vsyncadd [#allocation4], 0
      %s44 = sshll.u32 [#allocation5], 4
      %s45 = int_to_ptr.vmem [resolvable:$true] %s44
      %s46 = sshll.u32 %s1, 4
      %s47 = int_to_ptr.hbm [resolvable:$true] %s46
      %49 = dma.vmem_to_hbm [thread:$0]  %s45, 128, %s47, [#allocation4]
    $region13: #{tpu_custom_call.1} parent=1 // pred_fallthru
      _
    // Predicated region
    $region14: #{tpu_custom_call.1} parent=1 // pred_check
      _
    $region15: #{tpu_custom_call.1} parent=1 // pred_check_branch
      %51 = sbr.rel (0) target = $region17
    $region16: #{tpu_custom_call.1} parent=1 // pred_region
      %53 = dma.done [#allocation4], 128
    $region17: #{tpu_custom_call.1} parent=1 // pred_fallthru
      _
    %54 = vsyncpa [#allocation3], 1
    %55 = vsyncpa [#allocation4], 1

</llo_original>
